<compile_context>
chip_gen: v6e
topology: v6e:2x2x1
jax: 0.10.0
libtpu: 0.0.40
codegen_flags: <defaults>
</compile_context>

<pallas_src>
import functools
import math

import jax
import jax.numpy as jnp
from jax.experimental import pallas as pl
from jax.experimental.pallas import tpu as pltpu


def _ada_layer_norm_kernel(ss_ref, x_ref, o_ref, *, eps, d):
    inv_d = 1.0 / d
    # Two-pass statistics over the feature (lane) dim; the block is VMEM-resident
    # so the re-read for the second pass is nearly free (3 vld/cycle).
    mean = jnp.sum(x_ref[...].astype(jnp.float32), axis=-1, keepdims=True) * inv_d
    xc = x_ref[...].astype(jnp.float32) - mean                  # centered, f32
    var = jnp.sum(xc * xc, axis=-1, keepdims=True) * inv_d
    inv_std = jax.lax.rsqrt(var + eps)                          # EUP slot (free-ish)

    ss = ss_ref[...].astype(jnp.float32)                        # (2, D): row0=scale, row1=shift
    scale = ss[0:1, :]
    shift = ss[1:2, :]
    o_ref[...] = (xc * inv_std * (1.0 + scale) + shift).astype(o_ref.dtype)


def _num_tensorcores():
    """Best-effort TensorCores-per-device count (v7x has 2); defaults to 1."""
    try:
        info = pltpu.get_tpu_info()
        for attr in ("num_cores", "core_count", "tensorcore_count", "num_tensorcores"):
            v = getattr(info, attr, None)
            if isinstance(v, int) and v > 0:
                return v
    except Exception:
        pass
    try:
        v = getattr(jax.devices()[0], "num_cores", None)
        if isinstance(v, int) and v > 0:
            return v
    except Exception:
        pass
    return 1


def _choose_row_tile(n_rows, d, itemsize, num_cores):
    """Rows per block, sized by bytes.  Returns (row_tile, needs_pad).

    Per-element VMEM footprint across the pipeline: 2x in + 2x out double
    buffers in the storage dtype plus ~3 f32 temporaries inside the kernel.
    """
    vmem_target = 32 * 1024 * 1024                 # total working-set target
    per_elem = 4 * itemsize + 12
    max_rows = min(n_rows, vmem_target // (per_elem * max(1, d)))
    max_rows = max(8, (max_rows // 8) * 8)

    if n_rows % 8 == 0:
        fallback = None
        t = max_rows
        while t >= 8:
            if n_rows % t == 0:                     # exact cover -> no pad, no slice
                if fallback is None:
                    fallback = t
                # Prefer a step count that load-balances across TensorCores.
                if num_cores <= 1 or (n_rows // t) % num_cores == 0:
                    return t, False
            t -= 8
        return fallback, False                      # t=8 always divides n_rows here

    # n_rows not a multiple of 8: one full block (block == full array dim) is
    # always layout-legal; use it if it fits the byte budget.
    if n_rows * d * per_elem <= vmem_target:
        return n_rows, False
    # TODO(synk): rare fallback (huge, non-multiple-of-8 N) still pays one extra
    # HBM pass for pad + slice; an in-kernel masked tail store would avoid it.
    return max_rows, True


def ada_layer_norm(x, timestep, emb_table, weight, bias, *, eps=1e-5):
    """AdaLayerNorm.forward(x, timestep).

    x:         (..., D) activations.
    timestep:  scalar int index into the embedding table.
    emb_table: (num_embeddings, D)     -- nn.Embedding weight.
    weight:    (2*D, D), bias: (2*D,)  -- nn.Linear(D, 2*D) parameters.
    """
    D = x.shape[-1]

    # ---- tiny scalar path (embedding gather + SiLU + Linear) in plain XLA ----
    # A 1-row matmul cannot fill any MXU; a Pallas call would only add overhead.
    e = emb_table[timestep].astype(jnp.float32)                 # (D,)
    e = e * jax.nn.sigmoid(e)                                   # SiLU
    ss = jax.lax.dot_general(                                   # e @ weight.T, no f32 weight copy
        e.astype(weight.dtype), weight,
        dimension_numbers=(((0,), (1,)), ((), ())),
        preferred_element_type=jnp.float32)
    ss = ss + bias.astype(jnp.float32)                          # (2*D,)
    scale_shift = ss.reshape(2, D)                              # row 0 = scale, row 1 = shift

    # ---- LayerNorm + FiLM modulation in Pallas ----
    # TODO(synk): for best lane utilization D should be a multiple of 128; with
    # smaller D the stores become masked partial-lane vst.msk (correct, slower).
    lead = x.shape[:-1]
    n = math.prod(lead) if lead else 1
    x2d = x.reshape(n, D)

    num_cores = _num_tensorcores()
    row_tile, needs_pad = _choose_row_tile(n, D, x2d.dtype.itemsize, num_cores)

    if needs_pad:
        n_pad = pl.cdiv(n, row_tile) * row_tile
        x_in = jnp.pad(x2d, ((0, n_pad - n), (0, 0)))
    else:
        n_pad, x_in = n, x2d
    grid = n_pad // row_tile

    def call(dim_semantics):
        return pl.pallas_call(
            functools.partial(_ada_layer_norm_kernel, eps=float(eps), d=D),
            out_shape=jax.ShapeDtypeStruct((n_pad, D), x.dtype),
            grid_spec=pltpu.PrefetchScalarGridSpec(
                num_scalar_prefetch=0,
                grid=(grid,),
                in_specs=[
                    # lane-dense scale/shift block, reused by every grid step
                    pl.BlockSpec((2, D), lambda i: (0, 0)),
                    # NOTE: add pipeline_mode=pl.Buffered(3) here only if xprof
                    # shows exposed per-step DMA (tiny D -> sub-MiB blocks).
                    pl.BlockSpec((row_tile, D), lambda i: (i, 0)),
                ],
                out_specs=pl.BlockSpec((row_tile, D), lambda i: (i, 0)),
            ),
            compiler_params=pltpu.CompilerParams(
                dimension_semantics=dim_semantics,
                vmem_limit_bytes=48 * 1024 * 1024),
        )(scale_shift, x_in)

    if num_cores > 1 and grid % num_cores == 0:
        # v7x: shard the row axis across both TensorCores.
        try:
            y2d = call((pltpu.CORE_PARALLEL,))
        except Exception:
            y2d = call(("arbitrary",))      # this generation rejects CORE_PARALLEL
    else:
        y2d = call(("arbitrary",))          # single TC: the grid is a sequential loop

    if n_pad != n:
        y2d = y2d[:n]
    return y2d.reshape(*lead, D)


if __name__ == "__main__":
    # Small shapes consistent with the module: x (batch, seq, hidden), scalar timestep.
    B, S, D = 2, 8, 32
    num_embeddings = 16
    eps = 1e-5

    key = jax.random.PRNGKey(0)
    k1, k2, k3, k4 = jax.random.split(key, 4)
    x = jax.random.normal(k1, (B, S, D), dtype=jnp.float32)
    emb_table = jax.random.normal(k2, (num_embeddings, D), dtype=jnp.float32)
    weight = 0.02 * jax.random.normal(k3, (2 * D, D), dtype=jnp.float32)
    bias = 0.02 * jax.random.normal(k4, (2 * D,), dtype=jnp.float32)
    timestep = jnp.array(3, dtype=jnp.int32)

    y = ada_layer_norm(x, timestep, emb_table, weight, bias, eps=eps)
    y = jax.block_until_ready(y)

    # Pure-JAX reference (same semantics as the PyTorch forward).
    e = emb_table[timestep]
    e = e * jax.nn.sigmoid(e)
    ss = e @ weight.T + bias
    scale_ref, shift_ref = ss[:D], ss[D:]                      # torch.chunk(emb, 2)
    mean = x.mean(axis=-1, keepdims=True)
    var = ((x - mean) ** 2).mean(axis=-1, keepdims=True)
    xn = (x - mean) / jnp.sqrt(var + eps)
    ref = xn * (1.0 + scale_ref) + shift_ref
    assert jnp.allclose(y, ref, atol=1e-4, rtol=1e-4), "mismatch vs reference"

    print("KERNEL_OK")
</pallas_src>

<mosaic_0001>
module attributes {stable_mosaic.version = 11 : i64} {
  func.func @_ada_layer_norm_kernel(%arg0: i32, %arg1: memref<2x32xf32, #tpu.memory_space<vmem>>, %arg2: memref<16x32xf32, #tpu.memory_space<vmem>>, %arg3: memref<16x32xf32, #tpu.memory_space<vmem>>) attributes {dimension_semantics = [#tpu.dimension_semantics<arbitrary>], iteration_bounds = array<i64: 1>, scalar_prefetch = 0 : i64, scratch_operands = 0 : i64, tpu.core_type = #tpu.core_type<tc>, window_params = [{pipeline_mode = #tpu.pipeline_mode<synchronous>, transform_indices = @transform_0, window_bounds = array<i64: 2, 32>}, {transform_indices = @transform_1, window_bounds = array<i64: 16, 32>}, {transform_indices = @transform_2, window_bounds = array<i64: 16, 32>}]} {
    %c0 = arith.constant 0 : index
    %c0_0 = arith.constant 0 : index
    %0 = vector.load %arg2[%c0, %c0_0] : memref<16x32xf32, #tpu.memory_space<vmem>>, vector<16x32xf32>
    %cst = arith.constant dense<0.000000e+00> : vector<16xf32>
    %1 = vector.multi_reduction <add>, %0, %cst [1] : vector<16x32xf32> to vector<16xf32>
    %2 = vector.shape_cast %1 : vector<16xf32> to vector<16x1xf32>
    %cst_1 = arith.constant 3.125000e-02 : f32
    %3 = vector.broadcast %cst_1 : f32 to vector<16x1xf32>
    %4 = arith.mulf %2, %3 : vector<16x1xf32>
    %c0_2 = arith.constant 0 : index
    %c0_3 = arith.constant 0 : index
    %5 = vector.load %arg2[%c0_2, %c0_3] : memref<16x32xf32, #tpu.memory_space<vmem>>, vector<16x32xf32>
    %6 = vector.broadcast %4 : vector<16x1xf32> to vector<16x32xf32>
    %7 = arith.subf %5, %6 : vector<16x32xf32>
    %8 = arith.mulf %7, %7 : vector<16x32xf32>
    %cst_4 = arith.constant dense<0.000000e+00> : vector<16xf32>
    %9 = vector.multi_reduction <add>, %8, %cst_4 [1] : vector<16x32xf32> to vector<16xf32>
    %10 = vector.shape_cast %9 : vector<16xf32> to vector<16x1xf32>
    %cst_5 = arith.constant 3.125000e-02 : f32
    %11 = vector.broadcast %cst_5 : f32 to vector<16x1xf32>
    %12 = arith.mulf %10, %11 : vector<16x1xf32>
    %cst_6 = arith.constant 9.99999974E-6 : f32
    %13 = vector.broadcast %cst_6 : f32 to vector<16x1xf32>
    %14 = arith.addf %12, %13 : vector<16x1xf32>
    %15 = math.rsqrt %14 : vector<16x1xf32>
    %c0_7 = arith.constant 0 : index
    %c0_8 = arith.constant 0 : index
    %16 = vector.load %arg1[%c0_7, %c0_8] : memref<2x32xf32, #tpu.memory_space<vmem>>, vector<2x32xf32>
    %17 = vector.extract_strided_slice %16 {offsets = [0, 0], sizes = [1, 32], strides = [1, 1]} : vector<2x32xf32> to vector<1x32xf32>
    %18 = vector.extract_strided_slice %16 {offsets = [1, 0], sizes = [1, 32], strides = [1, 1]} : vector<2x32xf32> to vector<1x32xf32>
    %19 = vector.broadcast %15 : vector<16x1xf32> to vector<16x32xf32>
    %20 = arith.mulf %7, %19 : vector<16x32xf32>
    %cst_9 = arith.constant 1.000000e+00 : f32
    %21 = vector.broadcast %cst_9 : f32 to vector<1x32xf32>
    %22 = arith.addf %21, %17 : vector<1x32xf32>
    %23 = vector.broadcast %22 : vector<1x32xf32> to vector<16x32xf32>
    %24 = arith.mulf %20, %23 : vector<16x32xf32>
    %25 = vector.broadcast %18 : vector<1x32xf32> to vector<16x32xf32>
    %26 = arith.addf %24, %25 : vector<16x32xf32>
    %c0_10 = arith.constant 0 : index
    %c0_11 = arith.constant 0 : index
    %27 = vector.load %arg3[%c0_10, %c0_11] : memref<16x32xf32, #tpu.memory_space<vmem>>, vector<16x32xf32>
    tpu.vector_store %arg3[%c0_10, %c0_11], %26 {strides = array<i32>} : memref<16x32xf32, #tpu.memory_space<vmem>>, vector<16x32xf32>,
    return
  }
  func.func @transform_0(%arg0: i32) -> (i32, i32) {
    %c0_i32 = arith.constant 0 : i32
    %c0_i32_0 = arith.constant 0 : i32
    %c0_i32_1 = arith.constant 0 : i32
    return %c0_i32, %c0_i32_0 : i32, i32
  }
  func.func @transform_1(%arg0: i32) -> (i32, i32) {
    %c0_i32 = arith.constant 0 : i32
    %c0_i32_0 = arith.constant 0 : i32
    return %arg0, %c0_i32 : i32, i32
  }
  func.func @transform_2(%arg0: i32) -> (i32, i32) {
    %c0_i32 = arith.constant 0 : i32
    %c0_i32_0 = arith.constant 0 : i32
    return %arg0, %c0_i32 : i32, i32
  }
}

</mosaic_0001>

<llo_original>
// kernel: tpu_custom_call.1
$region0: #{tpu_custom_call.1}
  #allocation0 [shape = 'u32[]', space=smem, size = 0x4, offset = 0x4, fixed_abs, tag = 'smem constant byte address 0x4 - core index']
  #allocation1 [shape = 'u32[144,128]{1,0:T(1,128)}', space=vmem, size = 0x12000, scoped, tag = 'internal scratch']
  %s0 = inlined_call_operand.hbm [shape: f32[2,32], index: 0, kind: input, shape index: {}]
  %s1 = inlined_call_operand.hbm [shape: f32[16,32], index: 1, kind: input, shape index: {}]
  %s2 = inlined_call_operand.hbm [shape: f32[16,32], index: 2, kind: output, shape index: {}]
  %s3 = sld [smem:[#allocation0]]
  $region26: #{tpu_custom_call.1} parent=0
    _
  %s5 = ssub.s32 1, %s3
  %s6 = scalar_select 0, %s5, %s3
  $region1: #{tpu_custom_call.1} parent=0
    #allocation2 [shape = 'u8[1024]{0}', space=vmem, size = 0x400, scoped, tag = 'input window, operand 0, single buffered']
    #allocation3 [shape = 's32[1]{0}', space=sflag, size = 0x4, scoped, tag = 'scoped memory for tpu_custom_call.1']
    #allocation4 [shape = 's32[1]{0}', space=sflag, size = 0x4, scoped, tag = 'scoped memory for tpu_custom_call.1']
    #allocation5 [shape = 'u8[8192]{0}', space=vmem, size = 0x2000, scoped, tag = 'input window, operand 1, single buffered']
    #allocation6 [shape = 's32[1]{0}', space=sflag, size = 0x4, scoped, tag = 'scoped memory for tpu_custom_call.1']
    #allocation7 [shape = 'u8[8192]{0}', space=vmem, size = 0x2000, scoped, tag = 'output window, operand 0, single buffered']
    %7 = vsyncpa [#allocation3], 0
    %8 = vsyncpa [#allocation6], 0
    %9 = vsyncpa [#allocation4], 0
    // Predicated region
    $region2: #{tpu_custom_call.1} parent=1 // pred_check
      _
    $region3: #{tpu_custom_call.1} parent=1 // pred_check_branch
      %11 = sbr.rel (0) target = $region5
    $region4: #{tpu_custom_call.1} parent=1 // pred_region
      %s13 = ssub.s32 32, 32
      %14 = vsyncadd [#allocation3], %s13
      %s16 = sshll.u32 [#allocation2], 4
      %s17 = int_to_ptr.vmem [resolvable:$true] %s16
      %19 = dma.hbm_to_vmem [thread:$0]  %s0, 32, %s17, [#allocation3]
    $region5: #{tpu_custom_call.1} parent=1 // pred_fallthru
      _
    // Predicated region
    $region6: #{tpu_custom_call.1} parent=1 // pred_check
      _
    $region7: #{tpu_custom_call.1} parent=1 // pred_check_branch
      %21 = sbr.rel (0) target = $region9
    $region8: #{tpu_custom_call.1} parent=1 // pred_region
      %s23 = ssub.s32 256, 256
      %24 = vsyncadd [#allocation6], %s23
      %s25 = sshll.u32 [#allocation5], 4
      %s26 = int_to_ptr.vmem [resolvable:$true] %s25
      %31 = dma.hbm_to_vmem [thread:$0]  %s1, 256, %s26, [#allocation6], 128, 128, 8
    $region9: #{tpu_custom_call.1} parent=1 // pred_fallthru
      _
    // Predicated region
    $region10: #{tpu_custom_call.1} parent=1 // pred_check
      _
    $region11: #{tpu_custom_call.1} parent=1 // pred_check_branch
      %33 = sbr.rel (0) target = $region13
    $region12: #{tpu_custom_call.1} parent=1 // pred_region
      %34 = dma.done [#allocation3], 32
    $region13: #{tpu_custom_call.1} parent=1 // pred_fallthru
      _
    // Predicated region
    $region14: #{tpu_custom_call.1} parent=1 // pred_check
      _
    $region15: #{tpu_custom_call.1} parent=1 // pred_check_branch
      %36 = sbr.rel (0) target = $region17
    $region16: #{tpu_custom_call.1} parent=1 // pred_region
      %37 = dma.done [#allocation6], 256
    $region17: #{tpu_custom_call.1} parent=1 // pred_fallthru
      _
    %v38 = vld [vmem:[#allocation5] sm:$0xff]
    %v39 = vld [vmem:[#allocation5 + $0x8] sm:$0xff]
    %vm40 = vcmask 261120
    %v41 = vsel %vm40, %v38, 0.0
    %42 = vadd.xlane.f32.xlu0 %v41
    %v43 = vpop.xlane.xlu0 %42
    %v44 = vsel %vm40, %v39, 0.0
    %45 = vadd.xlane.f32.xlu0 %v44
    %v46 = vpop.xlane.xlu0 %45
    %v47 = vmul.f32 %v43, 0.03125
    %v48 = vmul.f32 %v46, 0.03125
    %v49 = vsub.f32 %v38, %v47
    %v50 = vsub.f32 %v39, %v48
    %v51 = vmul.f32 %v49, %v49
    %v52 = vmul.f32 %v50, %v50
    %v53 = vsel %vm40, %v51, 0.0
    %54 = vadd.xlane.f32.xlu0 %v53
    %v55 = vpop.xlane.xlu0 %54
    %v56 = vsel %vm40, %v52, 0.0
    %57 = vadd.xlane.f32.xlu0 %v56
    %v58 = vpop.xlane.xlu0 %57
    %v59 = vmul.f32 %v55, 0.03125
    %v60 = vmul.f32 %v58, 0.03125
    %v61 = vadd.f32 %v59, 1e-05
    %v62 = vadd.f32 %v60, 1e-05
    %v63 = vrsqrt.pop %v61
    %v64 = vrsqrt.pop %v62
    %v65 = vld [vmem:[#allocation2] sm:$0x3]
    %v66 = vmul.f32 %v49, %v63
    %v67 = vmul.f32 %v50, %v64
    %v68 = vadd.f32 %v65, 1.0
    %v69 = vlaneseq
    %v70 = vshrl.u32 %v69, 7
    %v71 = vsub.s32 0, %v70
    %v72 = vrot.slane %v68, %v71
    %v73 = vmul.f32 %v66, %v72
    %v74 = vmul.f32 %v67, %v72
    %v75 = vlaneseq
    %v76 = vshrl.u32 %v75, 7
    %v77 = vsub.s32 1, %v76
    %v78 = vrot.slane %v65, %v77
    %v79 = vadd.f32 %v73, %v78
    %v80 = vadd.f32 %v74, %v78
    %81 = vst.msk [vmem:[#allocation7] sm:$0xff] %vm40, %v79
    %82 = vst.msk [vmem:[#allocation7 + $0x8] sm:$0xff] %vm40, %v80
    // Predicated region
    $region18: #{tpu_custom_call.1} parent=1 // pred_check
      _
    $region19: #{tpu_custom_call.1} parent=1 // pred_check_branch
      %84 = sbr.rel (0) target = $region21
    $region20: #{tpu_custom_call.1} parent=1 // pred_region
      %s86 = ssub.s32 256, 256
      %87 = vsyncadd [#allocation4], %s86
      %s88 = sshll.u32 [#allocation7], 4
      %s89 = int_to_ptr.vmem [resolvable:$true] %s88
      %94 = dma.vmem_to_hbm [thread:$0]  %s89, 256, %s2, [#allocation4], 128, 128, 8
    $region21: #{tpu_custom_call.1} parent=1 // pred_fallthru
      _
    // Predicated region
    $region22: #{tpu_custom_call.1} parent=1 // pred_check
      _
    $region23: #{tpu_custom_call.1} parent=1 // pred_check_branch
      %96 = sbr.rel (0) target = $region25
    $region24: #{tpu_custom_call.1} parent=1 // pred_region
      %97 = dma.done [#allocation4], 256
    $region25: #{tpu_custom_call.1} parent=1 // pred_fallthru
      _
    %98 = vsyncpa [#allocation3], 1
    %99 = vsyncpa [#allocation6], 1
    %100 = vsyncpa [#allocation4], 1

</llo_original>
